<compile_context>
chip_gen: v6e
topology: v6e:2x2x1
jax: 0.10.0
libtpu: 0.0.40
codegen_flags: <defaults>
</compile_context>

<pallas_src>
import functools

import jax
import jax.numpy as jnp
from jax.experimental import pallas as pl
from jax.experimental.pallas import tpu as pltpu


def _round_up(x, m):
    return ((x + m - 1) // m) * m


def _vmem_capacity_bytes():
    """Per-core VMEM capacity; conservative 64 MiB (v7x) fallback if unqueryable."""
    cap = 64 * 1024 * 1024
    try:
        info = pltpu.get_tpu_info()
        cap = int(getattr(info, "vmem_capacity_bytes", cap))
    except Exception:
        pass
    return cap


def hyena_x_kernel(u_ref, w_in_ref, b_in_ref, cw_ref, cb_ref, w_out_ref,
                   b_out_ref, o_ref, acc_ref, *, tf, ts, halo, w_filt,
                   resident, gate_dtype):
    j = pl.program_id(1)

    @pl.when(j == 0)
    def _init():
        acc_ref[...] = jnp.zeros_like(acc_ref)

    # ---- select this feature tile's weights (resident: index the full arrays) --
    if resident:
        w_in = w_in_ref[j]                                            # (Dm, 3*Ts)
        b_in = b_in_ref[j]                                            # (1, 3*Ts)
        w_out = w_out_ref[pl.ds(pl.multiple_of(j * tf, tf), tf), :]   # (Tf, Dm)
    else:
        w_in = w_in_ref[0]
        b_in = b_in_ref[0]
        w_out = w_out_ref[...]

    # ---- in_proj for this feature tile (bf16 MXU, f32 accumulation) ------------
    uc = jnp.dot(u_ref[...], w_in, preferred_element_type=jnp.float32) + b_in
    uc = uc.astype(gate_dtype)                                        # (TL, 3*Ts)

    cw = cw_ref[...].astype(gate_dtype)                               # (TL, W)
    cb = cb_ref[...].astype(gate_dtype)                               # (TL, 1)

    # ---- depthwise causal conv along the feature axis + q*(k*v) gating ---------
    # Each packed section carries a left halo (>= W-1 columns) holding the
    # preceding original features, so tap `shift` of output column c is simply
    # input column c-shift of the same section: static lane slices only.
    y = None
    for s in range(3):
        sec = uc[:, s * ts:(s + 1) * ts]                              # (TL, Ts)
        z = sec[:, halo:halo + tf] * cw[:, w_filt - 1:w_filt] + cb    # shift-0 tap
        for shift in range(1, w_filt):
            z = z + (sec[:, halo - shift:halo - shift + tf]
                     * cw[:, w_filt - 1 - shift:w_filt - shift])
        y = z if y is None else y * z                                 # q, q*k, q*k*v
    y = y.astype(jnp.bfloat16)                                        # (TL, Tf)

    # ---- partial out_proj, accumulated in f32 across feature tiles -------------
    acc_ref[...] += jnp.dot(y, w_out, preferred_element_type=jnp.float32)

    @pl.when(j == pl.num_programs(1) - 1)
    def _finalize():
        o_ref[...] = (acc_ref[...] + b_out_ref[...]).astype(o_ref.dtype)


def _pack_in_proj(w_in_t, b_in, de, tf, ts, n_f):
    """Re-pack in_proj columns into per-feature-tile q/k/v blocks with a causal halo.

    Packed column c of tile j, section s corresponds to the original feature
    a = s*de + j*tf + (c - halo).  Columns with a < 0 (causal zero pad) or with
    j*tf + (c - halo) >= de (De padding of the last tile) are zero-filled.
    """
    halo = ts - tf
    jj = jnp.arange(n_f)[:, None, None]
    ss = jnp.arange(3)[None, :, None]
    cc = jnp.arange(ts)[None, None, :]
    rel = jj * tf + cc - halo                       # position within the section
    a = ss * de + rel                               # absolute original feature
    valid = (a >= 0) & (rel < de)
    idx = jnp.clip(a, 0, 3 * de - 1).reshape(n_f, 3 * ts)
    msk = valid.reshape(n_f, 3 * ts)
    w_packed = jnp.transpose(jnp.take(w_in_t, idx, axis=1), (1, 0, 2))
    w_packed = jnp.where(msk[:, None, :], w_packed, 0.0)              # (n_f, Dm, 3*Ts)
    b_packed = jnp.where(msk, b_in[idx], 0.0)[:, None, :]             # (n_f, 1, 3*Ts)
    return w_packed, b_packed


def mlp_hyena_x(u, params, *, short_filter_order=4, tl_target=1024, tf_target=1024,
                weights_resident=None, gate_dtype=jnp.float32):
    B, L, Dm = u.shape
    W = short_filter_order
    M = B * L                                      # fold batch into the sequence axis

    w_in_t = params["w_in"].T.astype(jnp.float32)            # (Dm, 3*De)
    b_in = params["b_in"].astype(jnp.float32)                # (3*De,)
    conv_w = params["conv_w"].astype(jnp.float32)            # (L, W)
    conv_b = params["conv_b"].astype(jnp.float32)            # (L,)
    w_out_t = params["w_out"].T                              # (De, Dm)
    b_out = params["b_out"][None, :].astype(jnp.float32)     # (1, Dm)
    De = w_out_t.shape[0]
    out_itemsize = u.dtype.itemsize

    cap = _vmem_capacity_bytes()
    budget = int(cap * 0.70)      # headroom for compiler scratch / pipeline buffers

    # ---- tile selection --------------------------------------------------------
    if De <= tf_target:
        Tf = De
    else:
        Tf = (tf_target // 128) * 128              # lane-aligned feature tiles
        if Tf == 0:
            Tf = max(8, (tf_target // 8) * 8)      # tiny-De fallback (tests)
    TL = max(8, _round_up(min(tl_target, M), 8))

    def footprint(tl, tf, resident):
        ts = _round_up(tf + W - 1, 128)
        nf = pl.cdiv(De, tf)
        win = Dm * 3 * ts * 2 + 3 * ts * 4         # packed W_in (bf16) + b_in tile
        wout = tf * Dm * 2                         # W_out tile (bf16)
        by = 2 * tl * Dm * 2                       # u tile (bf16), double-buffered
        by += 2 * tl * Dm * out_itemsize           # out tile
        by += tl * Dm * 4                          # f32 accumulator scratch
        by += 2 * tl * (W + 1) * 4                 # conv filter + bias tiles
        by += 2 * Dm * 4                           # b_out
        by += 2 * (nf if resident else 1) * (win + wout)
        by += tl * 3 * ts * 4 + 4 * tl * tf * 4    # in-kernel f32 temporaries
        return by, ts, nf

    # shrink tiles until the streamed-weight footprint fits the VMEM budget
    while True:
        fp, Ts, n_f = footprint(TL, Tf, False)
        if fp <= budget or (TL <= 128 and Tf <= 128):
            break
        if Tf > 128 and Dm * 3 * Ts >= TL * Dm:
            Tf = max(128, ((Tf // 2) // 128) * 128)
        elif TL > 128:
            TL = max(128, ((TL // 2) // 8) * 8)
        elif Tf > 128:
            Tf = max(128, ((Tf // 2) // 128) * 128)
        else:
            break
    fp, Ts, n_f = footprint(TL, Tf, False)

    if weights_resident is None:                   # keep all weights VMEM-resident?
        weights_resident = footprint(TL, Tf, True)[0] <= budget
    fp = footprint(TL, Tf, bool(weights_resident))[0]

    halo = Ts - Tf
    assert halo >= W - 1, (halo, W)                # causal halo must cover the taps
    De_p = n_f * Tf
    M_p = _round_up(M, TL)
    n_m = M_p // TL

    # ---- one-time layout glue (outside the kernel) -----------------------------
    u2 = u.reshape(M, Dm).astype(jnp.bfloat16)     # fold batch; halve u HBM read
    cw_full = jnp.tile(conv_w, (B, 1))             # per-row (= per-L) filters
    cb_full = jnp.tile(conv_b, (B,))[:, None]
    if M_p != M:
        pad = M_p - M
        u2 = jnp.pad(u2, ((0, pad), (0, 0)))
        cw_full = jnp.pad(cw_full, ((0, pad), (0, 0)))
        cb_full = jnp.pad(cb_full, ((0, pad), (0, 0)))

    w_in_p, b_in_p = _pack_in_proj(w_in_t, b_in, De, Tf, Ts, n_f)
    w_in_p = w_in_p.astype(jnp.bfloat16)
    w_out_p = w_out_t.astype(jnp.bfloat16)
    if De_p != De:
        w_out_p = jnp.pad(w_out_p, ((0, De_p - De), (0, 0)))   # padded rows are zero

    kernel = functools.partial(hyena_x_kernel, tf=Tf, ts=Ts, halo=halo, w_filt=W,
                               resident=bool(weights_resident),
                               gate_dtype=gate_dtype)

    if weights_resident:
        w_specs = [
            pl.BlockSpec((n_f, Dm, 3 * Ts), lambda m, j: (0, 0, 0)),   # W_in (all)
            pl.BlockSpec((n_f, 1, 3 * Ts), lambda m, j: (0, 0, 0)),    # b_in (all)
        ]
        wout_spec = pl.BlockSpec((De_p, Dm), lambda m, j: (0, 0))      # W_out (all)
    else:
        w_specs = [
            pl.BlockSpec((1, Dm, 3 * Ts), lambda m, j: (j, 0, 0)),     # W_in tile j
            pl.BlockSpec((1, 1, 3 * Ts), lambda m, j: (j, 0, 0)),      # b_in tile j
        ]
        wout_spec = pl.BlockSpec((Tf, Dm), lambda m, j: (j, 0))        # W_out tile j

    # advisory cost estimate for the XLA scheduler
    flops = (2 * M_p * Dm * 3 * Ts * n_f            # in_proj (incl. halo columns)
             + M_p * n_f * 3 * Tf * (2 * W + 2)     # conv taps + gating
             + 2 * M_p * De_p * Dm)                 # out_proj
    weight_bytes = (w_in_p.size + w_out_p.size) * 2 + (b_in_p.size + b_out.size) * 4
    bytes_accessed = (M_p * Dm * (2 + out_itemsize)
                      + M_p * (W + 1) * 4
                      + (1 if weights_resident else n_m) * weight_bytes)

    vmem_limit = int(min(max(cap - (8 << 20), 32 << 20),
                         max(int(fp * 1.3) + (4 << 20), 32 << 20)))

    out = pl.pallas_call(
        kernel,
        out_shape=jax.ShapeDtypeStruct((M_p, Dm), u.dtype),
        grid=(n_m, n_f),
        in_specs=[pl.BlockSpec((TL, Dm), lambda m, j: (m, 0))] + w_specs + [
            pl.BlockSpec((TL, W), lambda m, j: (m, 0)),                # conv filter
            pl.BlockSpec((TL, 1), lambda m, j: (m, 0)),                # conv bias
            wout_spec,
            pl.BlockSpec((1, Dm), lambda m, j: (0, 0)),                # b_out
        ],
        out_specs=pl.BlockSpec((TL, Dm), lambda m, j: (m, 0)),
        scratch_shapes=[pltpu.VMEM((TL, Dm), jnp.float32)],            # out_proj acc
        compiler_params=pltpu.CompilerParams(
            dimension_semantics=("parallel", "arbitrary"),
            vmem_limit_bytes=vmem_limit),
        cost_estimate=pl.CostEstimate(flops=int(flops), transcendentals=0,
                                      bytes_accessed=int(bytes_accessed)),
    )(u2, w_in_p, b_in_p, cw_full, cb_full, w_out_p, b_out)

    return out[:M].reshape(B, L, Dm)
    # TODO(synk): set gate_dtype=jnp.bfloat16 on v6e/v7x (bf16 VPU) for ~2x on the
    # conv/gating VALU work; kept f32 by default so v5e (no bf16 VPU) stays exact.


def init_params(key, d_model, l_max, expansion_ratio=2, short_filter_order=4):
    """Deterministic init mimicking PyTorch's uniform(-1/sqrt(fan_in), ...)."""
    De = d_model * expansion_ratio
    ks = jax.random.split(key, 6)

    def unif(k, shape, fan_in):
        bound = 1.0 / (fan_in ** 0.5)
        return jax.random.uniform(k, shape, jnp.float32, -bound, bound)

    return dict(
        w_in=unif(ks[0], (3 * De, d_model), d_model),          # (out, in)
        b_in=unif(ks[1], (3 * De,), d_model),
        conv_w=unif(ks[2], (l_max, short_filter_order), short_filter_order),
        conv_b=unif(ks[3], (l_max,), short_filter_order),
        w_out=unif(ks[4], (d_model, De), De),                  # (out, in)
        b_out=unif(ks[5], (d_model,), De),
    )


def reference_forward(u, params, short_filter_order=4, *, matmul_dtype=jnp.float32):
    """Pure-JAX reference of the PyTorch forward pass (optionally bf16 matmuls)."""
    w_in_t = params["w_in"].T.astype(matmul_dtype)
    uc = jnp.dot(u.astype(matmul_dtype), w_in_t,
                 preferred_element_type=jnp.float32) + params["b_in"]
    B, L, F = uc.shape
    W = short_filter_order
    ucp = jnp.pad(uc, ((0, 0), (0, 0), (W - 1, 0)))
    acc = jnp.broadcast_to(params["conv_b"][None, :, None], (B, L, F))
    for i in range(W):
        acc = acc + ucp[:, :, i:i + F] * params["conv_w"][None, :, i:i + 1]
    De = F // 3
    q, k, v = acc[..., :De], acc[..., De:2 * De], acc[..., 2 * De:]
    y = q * (k * v)
    out = jnp.dot(y.astype(matmul_dtype), params["w_out"].T.astype(matmul_dtype),
                  preferred_element_type=jnp.float32) + params["b_out"]
    return out


if __name__ == "__main__":
    # Small shapes consistent with the module: u is (batch, l_max, d_model).
    B, d_model, l_max = 2, 16, 16
    expansion_ratio, short_filter_order = 2, 4

    key = jax.random.PRNGKey(0)
    k_u, k_p = jax.random.split(key)
    u = jax.random.normal(k_u, (B, l_max, d_model), jnp.float32)
    params = init_params(k_p, d_model, l_max, expansion_ratio, short_filter_order)

    ref_bf16 = reference_forward(u, params, short_filter_order,
                                 matmul_dtype=jnp.bfloat16)
    ref_f32 = reference_forward(u, params, short_filter_order,
                                matmul_dtype=jnp.float32)

    outs = []
    # 1) default tiling (single sequence / feature tile, auto weight residency)
    outs.append(mlp_hyena_x(u, params, short_filter_order=short_filter_order))
    # 2) forced tiling, streamed weights: sequence tiles + feature tiles + halo +
    #    f32 accumulator across feature tiles
    outs.append(mlp_hyena_x(u, params, short_filter_order=short_filter_order,
                            tl_target=8, tf_target=16, weights_resident=False))
    # 3) forced tiling, VMEM-resident weights: dynamic per-tile weight indexing
    outs.append(mlp_hyena_x(u, params, short_filter_order=short_filter_order,
                            tl_target=8, tf_target=16, weights_resident=True))

    for out in outs:
        out = jax.block_until_ready(out)
        assert out.shape == (B, l_max, d_model)
        assert jnp.allclose(out, ref_bf16, atol=2e-2, rtol=2e-2), (
            f"bf16-matched max err {jnp.max(jnp.abs(out - ref_bf16))}")
        assert jnp.allclose(out, ref_f32, atol=8e-2, rtol=8e-2), (
            f"f32 max err {jnp.max(jnp.abs(out - ref_f32))}")
    print("KERNEL_OK")
</pallas_src>

<mosaic_0001>
module attributes {stable_mosaic.version = 11 : i64} {
  func.func @hyena_x_kernel(%arg0: i32, %arg1: i32, %arg2: memref<32x16xbf16, #tpu.memory_space<vmem>>, %arg3: memref<1x16x384xbf16, #tpu.memory_space<vmem>>, %arg4: memref<1x1x384xf32, #tpu.memory_space<vmem>>, %arg5: memref<32x4xf32, #tpu.memory_space<vmem>>, %arg6: memref<32x1xf32, #tpu.memory_space<vmem>>, %arg7: memref<32x16xbf16, #tpu.memory_space<vmem>>, %arg8: memref<1x16xf32, #tpu.memory_space<vmem>>, %arg9: memref<32x16xf32, #tpu.memory_space<vmem>>, %arg10: memref<32x16xf32, #tpu.memory_space<vmem>>) attributes {dimension_semantics = [#tpu.dimension_semantics<parallel>, #tpu.dimension_semantics<arbitrary>], iteration_bounds = array<i64: 1, 1>, scalar_prefetch = 0 : i64, scratch_operands = 1 : i64, tpu.core_type = #tpu.core_type<tc>, window_params = [{transform_indices = @transform_0, window_bounds = array<i64: 32, 16>}, {pipeline_mode = #tpu.pipeline_mode<synchronous>, transform_indices = @transform_1, window_bounds = array<i64: 1, 16, 384>}, {pipeline_mode = #tpu.pipeline_mode<synchronous>, transform_indices = @transform_2, window_bounds = array<i64: 1, 1, 384>}, {transform_indices = @transform_3, window_bounds = array<i64: 32, 4>}, {transform_indices = @transform_4, window_bounds = array<i64: 32, 1>}, {pipeline_mode = #tpu.pipeline_mode<synchronous>, transform_indices = @transform_5, window_bounds = array<i64: 32, 16>}, {pipeline_mode = #tpu.pipeline_mode<synchronous>, transform_indices = @transform_6, window_bounds = array<i64: 1, 16>}, {transform_indices = @transform_7, window_bounds = array<i64: 32, 16>}]} {
    %c0_i32 = arith.constant 0 : i32
    %0 = arith.cmpi eq, %arg1, %c0_i32 : i32
    %1 = arith.extui %0 : i1 to i32
    %c0_i32_0 = arith.constant 0 : i32
    %2 = arith.cmpi ne, %1, %c0_i32_0 : i32
    scf.if %2 {
      %cst_18 = arith.constant 0.000000e+00 : f32
      %95 = vector.broadcast %cst_18 : f32 to vector<32x16xf32>
      %c0_19 = arith.constant 0 : index
      %c0_20 = arith.constant 0 : index
      %96 = vector.load %arg10[%c0_19, %c0_20] : memref<32x16xf32, #tpu.memory_space<vmem>>, vector<32x16xf32>
      tpu.vector_store %arg10[%c0_19, %c0_20], %95 {strides = array<i32>} : memref<32x16xf32, #tpu.memory_space<vmem>>, vector<32x16xf32>,
    } else {
    }
    %3 = arith.index_cast %arg1 : i32 to index
    %c0 = arith.constant 0 : index
    %c0_1 = arith.constant 0 : index
    %4 = vector.load %arg3[%3, %c0, %c0_1] : memref<1x16x384xbf16, #tpu.memory_space<vmem>>, vector<1x16x384xbf16>
    %5 = vector.shape_cast %4 : vector<1x16x384xbf16> to vector<16x384xbf16>
    %6 = arith.index_cast %arg1 : i32 to index
    %c0_2 = arith.constant 0 : index
    %c0_3 = arith.constant 0 : index
    %7 = vector.load %arg4[%6, %c0_2, %c0_3] : memref<1x1x384xf32, #tpu.memory_space<vmem>>, vector<1x1x384xf32>
    %8 = vector.shape_cast %7 : vector<1x1x384xf32> to vector<1x384xf32>
    %c32_i32 = arith.constant 32 : i32
    %9 = arith.muli %arg1, %c32_i32 : i32
    %10 = tpu.assume_multiple %9, 32 : i32
    %11 = arith.index_cast %10 : i32 to index
    %c0_4 = arith.constant 0 : index
    %12 = vector.load %arg7[%11, %c0_4] : memref<32x16xbf16, #tpu.memory_space<vmem>>, vector<32x16xbf16>
    %c0_5 = arith.constant 0 : index
    %c0_6 = arith.constant 0 : index
    %13 = vector.load %arg2[%c0_5, %c0_6] : memref<32x16xbf16, #tpu.memory_space<vmem>>, vector<32x16xbf16>
    %cst = arith.constant dense<0.000000e+00> : vector<32x384xf32>
    %14 = tpu.matmul %13, %5, %cst {dimension_numbers = #tpu.dot_dimension_numbers<[1], [0], [0], [1], [0, 0, 1, 1], [], []>} : vector<32x16xbf16>, vector<16x384xbf16>, vector<32x384xf32> -> vector<32x384xf32>
    %15 = vector.broadcast %8 : vector<1x384xf32> to vector<32x384xf32>
    %16 = arith.addf %14, %15 : vector<32x384xf32>
    %c0_7 = arith.constant 0 : index
    %c0_8 = arith.constant 0 : index
    %17 = vector.load %arg5[%c0_7, %c0_8] : memref<32x4xf32, #tpu.memory_space<vmem>>, vector<32x4xf32>
    %c0_9 = arith.constant 0 : index
    %c0_10 = arith.constant 0 : index
    %18 = vector.load %arg6[%c0_9, %c0_10] : memref<32x1xf32, #tpu.memory_space<vmem>>, vector<32x1xf32>
    %19 = vector.extract_strided_slice %16 {offsets = [0, 0], sizes = [32, 128], strides = [1, 1]} : vector<32x384xf32> to vector<32x128xf32>
    %20 = vector.extract_strided_slice %19 {offsets = [0, 96], sizes = [32, 32], strides = [1, 1]} : vector<32x128xf32> to vector<32x32xf32>
    %21 = vector.extract_strided_slice %17 {offsets = [0, 3], sizes = [32, 1], strides = [1, 1]} : vector<32x4xf32> to vector<32x1xf32>
    %22 = vector.broadcast %21 : vector<32x1xf32> to vector<32x32xf32>
    %23 = arith.mulf %20, %22 : vector<32x32xf32>
    %24 = vector.broadcast %18 : vector<32x1xf32> to vector<32x32xf32>
    %25 = arith.addf %23, %24 : vector<32x32xf32>
    %26 = vector.extract_strided_slice %19 {offsets = [0, 95], sizes = [32, 32], strides = [1, 1]} : vector<32x128xf32> to vector<32x32xf32>
    %27 = vector.extract_strided_slice %17 {offsets = [0, 2], sizes = [32, 1], strides = [1, 1]} : vector<32x4xf32> to vector<32x1xf32>
    %28 = vector.broadcast %27 : vector<32x1xf32> to vector<32x32xf32>
    %29 = arith.mulf %26, %28 : vector<32x32xf32>
    %30 = arith.addf %25, %29 : vector<32x32xf32>
    %31 = vector.extract_strided_slice %19 {offsets = [0, 94], sizes = [32, 32], strides = [1, 1]} : vector<32x128xf32> to vector<32x32xf32>
    %32 = vector.extract_strided_slice %17 {offsets = [0, 1], sizes = [32, 1], strides = [1, 1]} : vector<32x4xf32> to vector<32x1xf32>
    %33 = vector.broadcast %32 : vector<32x1xf32> to vector<32x32xf32>
    %34 = arith.mulf %31, %33 : vector<32x32xf32>
    %35 = arith.addf %30, %34 : vector<32x32xf32>
    %36 = vector.extract_strided_slice %19 {offsets = [0, 93], sizes = [32, 32], strides = [1, 1]} : vector<32x128xf32> to vector<32x32xf32>
    %37 = vector.extract_strided_slice %17 {offsets = [0, 0], sizes = [32, 1], strides = [1, 1]} : vector<32x4xf32> to vector<32x1xf32>
    %38 = vector.broadcast %37 : vector<32x1xf32> to vector<32x32xf32>
    %39 = arith.mulf %36, %38 : vector<32x32xf32>
    %40 = arith.addf %35, %39 : vector<32x32xf32>
    %41 = vector.extract_strided_slice %16 {offsets = [0, 128], sizes = [32, 128], strides = [1, 1]} : vector<32x384xf32> to vector<32x128xf32>
    %42 = vector.extract_strided_slice %41 {offsets = [0, 96], sizes = [32, 32], strides = [1, 1]} : vector<32x128xf32> to vector<32x32xf32>
    %43 = vector.extract_strided_slice %17 {offsets = [0, 3], sizes = [32, 1], strides = [1, 1]} : vector<32x4xf32> to vector<32x1xf32>
    %44 = vector.broadcast %43 : vector<32x1xf32> to vector<32x32xf32>
    %45 = arith.mulf %42, %44 : vector<32x32xf32>
    %46 = vector.broadcast %18 : vector<32x1xf32> to vector<32x32xf32>
    %47 = arith.addf %45, %46 : vector<32x32xf32>
    %48 = vector.extract_strided_slice %41 {offsets = [0, 95], sizes = [32, 32], strides = [1, 1]} : vector<32x128xf32> to vector<32x32xf32>
    %49 = vector.extract_strided_slice %17 {offsets = [0, 2], sizes = [32, 1], strides = [1, 1]} : vector<32x4xf32> to vector<32x1xf32>
    %50 = vector.broadcast %49 : vector<32x1xf32> to vector<32x32xf32>
    %51 = arith.mulf %48, %50 : vector<32x32xf32>
    %52 = arith.addf %47, %51 : vector<32x32xf32>
    %53 = vector.extract_strided_slice %41 {offsets = [0, 94], sizes = [32, 32], strides = [1, 1]} : vector<32x128xf32> to vector<32x32xf32>
    %54 = vector.extract_strided_slice %17 {offsets = [0, 1], sizes = [32, 1], strides = [1, 1]} : vector<32x4xf32> to vector<32x1xf32>
    %55 = vector.broadcast %54 : vector<32x1xf32> to vector<32x32xf32>
    %56 = arith.mulf %53, %55 : vector<32x32xf32>
    %57 = arith.addf %52, %56 : vector<32x32xf32>
    %58 = vector.extract_strided_slice %41 {offsets = [0, 93], sizes = [32, 32], strides = [1, 1]} : vector<32x128xf32> to vector<32x32xf32>
    %59 = vector.extract_strided_slice %17 {offsets = [0, 0], sizes = [32, 1], strides = [1, 1]} : vector<32x4xf32> to vector<32x1xf32>
    %60 = vector.broadcast %59 : vector<32x1xf32> to vector<32x32xf32>
    %61 = arith.mulf %58, %60 : vector<32x32xf32>
    %62 = arith.addf %57, %61 : vector<32x32xf32>
    %63 = arith.mulf %40, %62 : vector<32x32xf32>
    %64 = vector.extract_strided_slice %16 {offsets = [0, 256], sizes = [32, 128], strides = [1, 1]} : vector<32x384xf32> to vector<32x128xf32>
    %65 = vector.extract_strided_slice %64 {offsets = [0, 96], sizes = [32, 32], strides = [1, 1]} : vector<32x128xf32> to vector<32x32xf32>
    %66 = vector.extract_strided_slice %17 {offsets = [0, 3], sizes = [32, 1], strides = [1, 1]} : vector<32x4xf32> to vector<32x1xf32>
    %67 = vector.broadcast %66 : vector<32x1xf32> to vector<32x32xf32>
    %68 = arith.mulf %65, %67 : vector<32x32xf32>
    %69 = vector.broadcast %18 : vector<32x1xf32> to vector<32x32xf32>
    %70 = arith.addf %68, %69 : vector<32x32xf32>
    %71 = vector.extract_strided_slice %64 {offsets = [0, 95], sizes = [32, 32], strides = [1, 1]} : vector<32x128xf32> to vector<32x32xf32>
    %72 = vector.extract_strided_slice %17 {offsets = [0, 2], sizes = [32, 1], strides = [1, 1]} : vector<32x4xf32> to vector<32x1xf32>
    %73 = vector.broadcast %72 : vector<32x1xf32> to vector<32x32xf32>
    %74 = arith.mulf %71, %73 : vector<32x32xf32>
    %75 = arith.addf %70, %74 : vector<32x32xf32>
    %76 = vector.extract_strided_slice %64 {offsets = [0, 94], sizes = [32, 32], strides = [1, 1]} : vector<32x128xf32> to vector<32x32xf32>
    %77 = vector.extract_strided_slice %17 {offsets = [0, 1], sizes = [32, 1], strides = [1, 1]} : vector<32x4xf32> to vector<32x1xf32>
    %78 = vector.broadcast %77 : vector<32x1xf32> to vector<32x32xf32>
    %79 = arith.mulf %76, %78 : vector<32x32xf32>
    %80 = arith.addf %75, %79 : vector<32x32xf32>
    %81 = vector.extract_strided_slice %64 {offsets = [0, 93], sizes = [32, 32], strides = [1, 1]} : vector<32x128xf32> to vector<32x32xf32>
    %82 = vector.extract_strided_slice %17 {offsets = [0, 0], sizes = [32, 1], strides = [1, 1]} : vector<32x4xf32> to vector<32x1xf32>
    %83 = vector.broadcast %82 : vector<32x1xf32> to vector<32x32xf32>
    %84 = arith.mulf %81, %83 : vector<32x32xf32>
    %85 = arith.addf %80, %84 : vector<32x32xf32>
    %86 = arith.mulf %63, %85 : vector<32x32xf32>
    %87 = arith.truncf %86 : vector<32x32xf32> to vector<32x32xbf16>
    %c0_11 = arith.constant 0 : index
    %c0_12 = arith.constant 0 : index
    %88 = vector.load %arg10[%c0_11, %c0_12] : memref<32x16xf32, #tpu.memory_space<vmem>>, vector<32x16xf32>
    %cst_13 = arith.constant dense<0.000000e+00> : vector<32x16xf32>
    %89 = tpu.matmul %87, %12, %cst_13 {dimension_numbers = #tpu.dot_dimension_numbers<[1], [0], [0], [1], [0, 0, 1, 1], [], []>} : vector<32x32xbf16>, vector<32x16xbf16>, vector<32x16xf32> -> vector<32x16xf32>
    %90 = arith.addf %88, %89 : vector<32x16xf32>
    %c0_14 = arith.constant 0 : index
    %c0_15 = arith.constant 0 : index
    %91 = vector.load %arg10[%c0_14, %c0_15] : memref<32x16xf32, #tpu.memory_space<vmem>>, vector<32x16xf32>
    tpu.vector_store %arg10[%c0_14, %c0_15], %90 {strides = array<i32>} : memref<32x16xf32, #tpu.memory_space<vmem>>, vector<32x16xf32>,
    %c0_i32_16 = arith.constant 0 : i32
    %92 = arith.cmpi eq, %arg1, %c0_i32_16 : i32
    %93 = arith.extui %92 : i1 to i32
    %c0_i32_17 = arith.constant 0 : i32
    %94 = arith.cmpi ne, %93, %c0_i32_17 : i32
    scf.if %94 {
      %c0_18 = arith.constant 0 : index
      %c0_19 = arith.constant 0 : index
      %95 = vector.load %arg10[%c0_18, %c0_19] : memref<32x16xf32, #tpu.memory_space<vmem>>, vector<32x16xf32>
      %c0_20 = arith.constant 0 : index
      %c0_21 = arith.constant 0 : index
      %96 = vector.load %arg8[%c0_20, %c0_21] : memref<1x16xf32, #tpu.memory_space<vmem>>, vector<1x16xf32>
      %97 = vector.broadcast %96 : vector<1x16xf32> to vector<32x16xf32>
      %98 = arith.addf %95, %97 : vector<32x16xf32>
      %c0_22 = arith.constant 0 : index
      %c0_23 = arith.constant 0 : index
      %99 = vector.load %arg9[%c0_22, %c0_23] : memref<32x16xf32, #tpu.memory_space<vmem>>, vector<32x16xf32>
      tpu.vector_store %arg9[%c0_22, %c0_23], %98 {strides = array<i32>} : memref<32x16xf32, #tpu.memory_space<vmem>>, vector<32x16xf32>,
    } else {
    }
    return
  }
  func.func @transform_0(%arg0: i32, %arg1: i32) -> (i32, i32) {
    %c0_i32 = arith.constant 0 : i32
    %c0_i32_0 = arith.constant 0 : i32
    return %arg0, %c0_i32 : i32, i32
  }
  func.func @transform_1(%arg0: i32, %arg1: i32) -> (i32, i32, i32) {
    %c0_i32 = arith.constant 0 : i32
    %c0_i32_0 = arith.constant 0 : i32
    %c0_i32_1 = arith.constant 0 : i32
    %c0_i32_2 = arith.constant 0 : i32
    return %c0_i32, %c0_i32_0, %c0_i32_1 : i32, i32, i32
  }
  func.func @transform_2(%arg0: i32, %arg1: i32) -> (i32, i32, i32) {
    %c0_i32 = arith.constant 0 : i32
    %c0_i32_0 = arith.constant 0 : i32
    %c0_i32_1 = arith.constant 0 : i32
    %c0_i32_2 = arith.constant 0 : i32
    return %c0_i32, %c0_i32_0, %c0_i32_1 : i32, i32, i32
  }
  func.func @transform_3(%arg0: i32, %arg1: i32) -> (i32, i32) {
    %c0_i32 = arith.constant 0 : i32
    %c0_i32_0 = arith.constant 0 : i32
    return %arg0, %c0_i32 : i32, i32
  }
  func.func @transform_4(%arg0: i32, %arg1: i32) -> (i32, i32) {
    %c0_i32 = arith.constant 0 : i32
    %c0_i32_0 = arith.constant 0 : i32
    return %arg0, %c0_i32 : i32, i32
  }
  func.func @transform_5(%arg0: i32, %arg1: i32) -> (i32, i32) {
    %c0_i32 = arith.constant 0 : i32
    %c0_i32_0 = arith.constant 0 : i32
    %c0_i32_1 = arith.constant 0 : i32
    return %c0_i32, %c0_i32_0 : i32, i32
  }
  func.func @transform_6(%arg0: i32, %arg1: i32) -> (i32, i32) {
    %c0_i32 = arith.constant 0 : i32
    %c0_i32_0 = arith.constant 0 : i32
    %c0_i32_1 = arith.constant 0 : i32
    return %c0_i32, %c0_i32_0 : i32, i32
  }
  func.func @transform_7(%arg0: i32, %arg1: i32) -> (i32, i32) {
    %c0_i32 = arith.constant 0 : i32
    %c0_i32_0 = arith.constant 0 : i32
    return %arg0, %c0_i32 : i32, i32
  }
}

</mosaic_0001>

<llo_original>
// kernel: tpu_custom_call.1
$region0: #{tpu_custom_call.1}
  #allocation0 [shape = 'u32[]', space=smem, size = 0x4, offset = 0x4, fixed_abs, tag = 'smem constant byte address 0x4 - core index']
  #allocation1 [shape = 'u32[144,128]{1,0:T(1,128)}', space=vmem, size = 0x12000, scoped, tag = 'internal scratch']
  #allocation2 [shape = 'f32[32,16]{1,0:T(8,128)}', space=vmem, size = 0x4000, scoped, tag = 'scratch operand']
  %s0 = inlined_call_operand.vmem [shape: bf16[32,16], index: 0, kind: input, shape index: {}]
  %s1 = inlined_call_operand.vmem [shape: bf16[1,16,384], index: 1, kind: input, shape index: {}]
  %s2 = inlined_call_operand.vmem [shape: f32[1,1,384], index: 2, kind: input, shape index: {}]
  %s3 = inlined_call_operand.vmem [shape: f32[32,4], index: 3, kind: input, shape index: {}]
  %s4 = inlined_call_operand.vmem [shape: f32[32,1], index: 4, kind: input, shape index: {}]
  %s5 = inlined_call_operand.vmem [shape: bf16[32,16], index: 5, kind: input, shape index: {}]
  %s6 = inlined_call_operand.vmem [shape: f32[1,16], index: 6, kind: input, shape index: {}]
  %s7 = inlined_call_operand.vmem [shape: f32[32,16], index: 7, kind: output, shape index: {}]
  %s8 = sld [smem:[#allocation0]]
  $region46: #{tpu_custom_call.1} parent=0
    _
  %s10 = ssub.s32 1, %s8
  %s11 = scalar_select 0, %s10, %s8
  // Predicated region
  $region2: #{tpu_custom_call.1} parent=0 // pred_check
    _
  $region3: #{tpu_custom_call.1} parent=0 // pred_check_branch
    %13 = sbr.rel (0) target = $region5
  $region4: #{tpu_custom_call.1} parent=0 // pred_region
    _
  $region5: #{tpu_custom_call.1} parent=0 // pred_fallthru
    _
  // Predicated region
  $region6: #{tpu_custom_call.1} parent=0 // pred_check
    _
  $region7: #{tpu_custom_call.1} parent=0 // pred_check_branch
    %15 = sbr.rel (0) target = $region9
  $region8: #{tpu_custom_call.1} parent=0 // pred_region
    _
  $region9: #{tpu_custom_call.1} parent=0 // pred_fallthru
    _
  // Predicated region
  $region10: #{tpu_custom_call.1} parent=0 // pred_check
    _
  $region11: #{tpu_custom_call.1} parent=0 // pred_check_branch
    %17 = sbr.rel (0) target = $region13
  $region12: #{tpu_custom_call.1} parent=0 // pred_region
    _
  $region13: #{tpu_custom_call.1} parent=0 // pred_fallthru
    _
  // Predicated region
  $region14: #{tpu_custom_call.1} parent=0 // pred_check
    _
  $region15: #{tpu_custom_call.1} parent=0 // pred_check_branch
    %19 = sbr.rel (0) target = $region17
  $region16: #{tpu_custom_call.1} parent=0 // pred_region
    _
  $region17: #{tpu_custom_call.1} parent=0 // pred_fallthru
    _
  // Predicated region
  $region18: #{tpu_custom_call.1} parent=0 // pred_check
    _
  $region19: #{tpu_custom_call.1} parent=0 // pred_check_branch
    %21 = sbr.rel (0) target = $region21
  $region20: #{tpu_custom_call.1} parent=0 // pred_region
    _
  $region21: #{tpu_custom_call.1} parent=0 // pred_fallthru
    _
  // Predicated region
  $region22: #{tpu_custom_call.1} parent=0 // pred_check
    _
  $region23: #{tpu_custom_call.1} parent=0 // pred_check_branch
    %23 = sbr.rel (0) target = $region25
  $region24: #{tpu_custom_call.1} parent=0 // pred_region
    _
  $region25: #{tpu_custom_call.1} parent=0 // pred_fallthru
    _
  // Predicated region
  $region26: #{tpu_custom_call.1} parent=0 // pred_check
    _
  $region27: #{tpu_custom_call.1} parent=0 // pred_check_branch
    %25 = sbr.rel (0) target = $region29
  $region28: #{tpu_custom_call.1} parent=0 // pred_region
    _
  $region29: #{tpu_custom_call.1} parent=0 // pred_fallthru
    _
  %p27 = scmp.eq.s32.totalorder 0, 0
  // Predicated region
  $region30: #{tpu_custom_call.1} parent=0 // pred_check
    %p28 = pneg %p27
  $region31: #{tpu_custom_call.1} parent=0 // pred_check_branch
    %30 = sbr.rel (%p28) target = $region33
  $region32: #{tpu_custom_call.1} parent=0 // pred_region
    %vm31 = vcmask 130048
    %32 = vst.msk [vmem:[#allocation2] sm:$0xff] %vm31, 0.0
    %33 = vst.msk [vmem:[#allocation2 + $0x8] sm:$0xff] %vm31, 0.0
    %34 = vst.msk [vmem:[#allocation2 + $0x10] sm:$0xff] %vm31, 0.0
    %35 = vst.msk [vmem:[#allocation2 + $0x18] sm:$0xff] %vm31, 0.0
  $region33: #{tpu_custom_call.1} parent=0 // pred_fallthru
    _
  %s36 = smul.u32 0, 6
  %s37 = smul.addr %s36, 4
  %s38 = scalar_lea.vmem %s1, %s37
  %v39 = vld [vmem:[%s38] sm:$0xff]
  %v40 = vld [vmem:[%s38 + $0x8] sm:$0xf]
  %v41 = vld [vmem:[%s38 + $0xc] sm:$0xff]
  %v42 = vld [vmem:[%s38 + $0x14] sm:$0xf]
  %s43 = smul.u32 0, 3
  %s44 = scalar_lea.vmem %s2, %s43
  %v45 = vld [vmem:[%s44] sm:$0x7]
  %s46 = smul.u32 0, 32
  %s47 = sshra.s32 %s46, 3
  %s48 = sand.u32 %s46, 7
  %s49 = smul.addr %s47, 4
  %s50 = scalar_lea.vmem %s5, %s49
  %v51 = vld [vmem:[%s50] sm:$0xf]
  %v52 = vld [vmem:[%s50 + $0x4] sm:$0xf]
  %v53 = vld [vmem:[%s50 + $0x8] sm:$0xf]
  %v54 = vld [vmem:[%s50 + $0xc] sm:$0xf]
  %v55 = vld [vmem:[%s0] sm:$0xf]
  %v56 = vld [vmem:[%s0 + $0x4] sm:$0xf]
  %v57 = vld [vmem:[%s0 + $0x8] sm:$0xf]
  %v58 = vld [vmem:[%s0 + $0xc] sm:$0xf]
  %v60 = vlaneseq
  %v61 = vshrl.u32 %v60, 7
  %v62 = vsub.s32 0, %v61
  %v63 = vrot.slane %v45, %v62
  %v64 = vlaneseq
  %v65 = vshrl.u32 %v64, 7
  %v66 = vsub.s32 1, %v65
  %v67 = vrot.slane %v45, %v66
  %v68 = vlaneseq
  %v69 = vshrl.u32 %v68, 7
  %v70 = vsub.s32 2, %v69
  %v71 = vrot.slane %v45, %v70
  %v79 = vunpack.c.l.b16 %v55
  %v80 = vunpack.c.l.b16 %v56
  %v81 = vunpack.c.l.b16 %v57
  %v82 = vunpack.c.l.b16 %v58
  %v83 = vpack.c.b16 %v80, %v79
  %v84 = vpack.c.b16 %v82, %v81
  %v89 = vunpack.c.l.b16 %v39
  %v90 = vunpack.c.h.b16 %v39
  %v91 = vunpack.c.l.b16 %v40
  %v92 = vunpack.c.l.b16 %v41
  %v93 = vunpack.c.h.b16 %v41
  %v94 = vunpack.c.l.b16 %v42
  %v95 = vpack.c.b16 %v92, %v89
  %v96 = vpack.c.b16 %v93, %v90
  %v97 = vpack.c.b16 %v94, %v91
  %vm101 = vcmask 130048
  %v103 = vsel %vm101, %v83, 0
  %v106 = vsel %vm101, %v84, 0
  %108 = vmatprep.subr.bf16.mxu0 0
  %109 = vmatpush1.bf16.msra.mxu0 0
  %110 = vmatprep.subr.bf16.mxu0 0
  %111 = vmatpush1.bf16.msra.mxu0 0
  %112 = vmatprep.subr.bf16.mxu0 0
  %113 = vmatpush1.bf16.msra.mxu0 0
  %114 = vmatprep.subr.bf16.mxu0 0
  %115 = vmatpush1.bf16.msra.mxu0 0
  %116 = vmatprep.subr.bf16.mxu0 0
  %117 = vmatpush1.bf16.msra.mxu0 0
  %118 = vmatprep.subr.bf16.mxu0 0
  %119 = vmatpush1.bf16.msra.mxu0 0
  %120 = vmatprep.subr.bf16.mxu0 0
  %121 = vmatpush1.bf16.msra.mxu0 0
  %122 = vmatprep.subr.bf16.mxu0 %v96
  %123 = vmatpush1.bf16.msra.mxu0 %v95
  %124 = vmatprep.subr.bf16.mxu0 0
  %125 = vmatpush2.bf16.msra.mxu0 0
  %126 = vmatprep.subr.bf16.mxu0 0
  %127 = vmatpush2.bf16.msra.mxu0 0
  %128 = vmatprep.subr.bf16.mxu0 0
  %129 = vmatpush2.bf16.msra.mxu0 0
  %130 = vmatprep.subr.bf16.mxu0 0
  %131 = vmatpush2.bf16.msra.mxu0 0
  %132 = vmatprep.subr.bf16.mxu0 0
  %133 = vmatpush2.bf16.msra.mxu0 0
  %134 = vmatprep.subr.bf16.mxu0 0
  %135 = vmatpush2.bf16.msra.mxu0 0
  %136 = vmatprep.subr.bf16.mxu0 0
  %137 = vmatpush2.bf16.msra.mxu0 0
  %138 = vmatprep.subr.bf16.mxu0 0
  %139 = vmatpush2.bf16.msra.mxu0 0
  %140 = vmatprep.mubr.bf16.mxu0 0
  %141 = vmatmul.mubr.bf16.gmra.mxu0 %v103
  %v142 = vpop.f32.mrf.mxu0
  %v143 = vadd.f32 %v63, %v142
  %v144 = vpop.f32.mrf.mxu0
  %v145 = vadd.f32 %v67, %v144
  %v146 = vpop.f32.mrf.mxu0
  %v147 = vadd.f32 %v63, %v146
  %v148 = vpop.f32.mrf.mxu0
  %v149 = vadd.f32 %v67, %v148
  %150 = vmatprep.mubr.bf16.mxu0 0
  %151 = vmatmul.mubr.bf16.gmra.mxu0 %v106
  %v152 = vpop.f32.mrf.mxu0
  %v153 = vadd.f32 %v63, %v152
  %v154 = vpop.f32.mrf.mxu0
  %v155 = vadd.f32 %v67, %v154
  %v156 = vpop.f32.mrf.mxu0
  %v157 = vadd.f32 %v63, %v156
  %v158 = vpop.f32.mrf.mxu0
  %v159 = vadd.f32 %v67, %v158
  %160 = vdwg.mxu0
  %161 = vmatprep.subr.bf16.mxu0 0
  %162 = vmatpush1.bf16.msra.mxu0 0
  %163 = vmatprep.subr.bf16.mxu0 0
  %164 = vmatpush1.bf16.msra.mxu0 0
  %165 = vmatprep.subr.bf16.mxu0 0
  %166 = vmatpush1.bf16.msra.mxu0 0
  %167 = vmatprep.subr.bf16.mxu0 0
  %168 = vmatpush1.bf16.msra.mxu0 0
  %169 = vmatprep.subr.bf16.mxu0 0
  %170 = vmatpush1.bf16.msra.mxu0 0
  %171 = vmatprep.subr.bf16.mxu0 0
  %172 = vmatpush1.bf16.msra.mxu0 0
  %173 = vmatprep.subr.bf16.mxu0 0
  %174 = vmatpush1.bf16.msra.mxu0 0
  %175 = vmatprep.subr.bf16.mxu0 0
  %176 = vmatpush1.bf16.msra.mxu0 %v97
  %177 = vmatprep.subr.bf16.mxu0 0
  %178 = vmatpush2.bf16.msra.mxu0 0
  %179 = vmatprep.subr.bf16.mxu0 0
  %180 = vmatpush2.bf16.msra.mxu0 0
  %181 = vmatprep.subr.bf16.mxu0 0
  %182 = vmatpush2.bf16.msra.mxu0 0
  %183 = vmatprep.subr.bf16.mxu0 0
  %184 = vmatpush2.bf16.msra.mxu0 0
  %185 = vmatprep.subr.bf16.mxu0 0
  %186 = vmatpush2.bf16.msra.mxu0 0
  %187 = vmatprep.subr.bf16.mxu0 0
  %188 = vmatpush2.bf16.msra.mxu0 0
  %189 = vmatprep.subr.bf16.mxu0 0
  %190 = vmatpush2.bf16.msra.mxu0 0
  %191 = vmatprep.subr.bf16.mxu0 0
  %192 = vmatpush2.bf16.msra.mxu0 0
  %193 = vmatprep.mubr.bf16.mxu0 0
  %194 = vmatmul.mubr.bf16.gmra.mxu0 %v103
  %v195 = vpop.f32.mrf.mxu0
  %v196 = vadd.f32 %v71, %v195
  %v197 = vpop.f32.mrf.mxu0
  %v198 = vpop.f32.mrf.mxu0
  %v199 = vadd.f32 %v71, %v198
  %v200 = vpop.f32.mrf.mxu0
  %201 = vmatprep.mubr.bf16.mxu0 0
  %202 = vmatmul.mubr.bf16.gmra.mxu0 %v106
  %v203 = vpop.f32.mrf.mxu0
  %v204 = vadd.f32 %v71, %v203
  %v205 = vpop.f32.mrf.mxu0
  %v206 = vpop.f32.mrf.mxu0
  %v207 = vadd.f32 %v71, %v206
  %v208 = vpop.f32.mrf.mxu0
  %209 = vdwg.mxu0
  %v210 = vld [vmem:[%s3] sm:$0xff]
  %v211 = vld [vmem:[%s3 + $0x8] sm:$0xff]
  %v212 = vld [vmem:[%s3 + $0x10] sm:$0xff]
  %v213 = vld [vmem:[%s3 + $0x18] sm:$0xff]
  %v214 = vld [vmem:[%s4] sm:$0xff]
  %v215 = vld [vmem:[%s4 + $0x8] sm:$0xff]
  %v216 = vld [vmem:[%s4 + $0x10] sm:$0xff]
  %v217 = vld [vmem:[%s4 + $0x18] sm:$0xff]
  %219 = vset.pattern.permute.xlu0 3
  %220 = vperm.xlu0 %219, %v210
  %v221 = vpop.permute.xlu0 %220
  %224 = vset.pattern.permute.xlu0 3
  %225 = vperm.xlu0 %224, %v211
  %v226 = vpop.permute.xlu0 %225
  %229 = vset.pattern.permute.xlu0 3
  %230 = vperm.xlu0 %229, %v212
  %v231 = vpop.permute.xlu0 %230
  %234 = vset.pattern.permute.xlu0 3
  %235 = vperm.xlu0 %234, %v213
  %v236 = vpop.permute.xlu0 %235
  %v238 = vmul.f32 %v143, %v221
  %v239 = vmul.f32 %v147, %v226
  %v240 = vmul.f32 %v153, %v231
  %v241 = vmul.f32 %v157, %v236
  %243 = vset.pattern.permute.xlu0 0
  %244 = vperm.xlu0 %243, %v214
  %v245 = vpop.permute.xlu0 %244
  %248 = vset.pattern.permute.xlu0 0
  %249 = vperm.xlu0 %248, %v215
  %v250 = vpop.permute.xlu0 %249
  %253 = vset.pattern.permute.xlu0 0
  %254 = vperm.xlu0 %253, %v216
  %v255 = vpop.permute.xlu0 %254
  %258 = vset.pattern.permute.xlu0 0
  %259 = vperm.xlu0 %258, %v217
  %v260 = vpop.permute.xlu0 %259
  %v262 = vadd.f32 %v238, %v245
  %v263 = vadd.f32 %v239, %v250
  %v264 = vadd.f32 %v240, %v255
  %v265 = vadd.f32 %v241, %v260
  %266 = vset.pattern.permute.xlu0 2
  %267 = vperm.xlu0 %266, %v210
  %v268 = vpop.permute.xlu0 %267
  %270 = vset.pattern.permute.xlu0 2
  %271 = vperm.xlu0 %270, %v211
  %v272 = vpop.permute.xlu0 %271
  %274 = vset.pattern.permute.xlu0 2
  %275 = vperm.xlu0 %274, %v212
  %v276 = vpop.permute.xlu0 %275
  %278 = vset.pattern.permute.xlu0 2
  %279 = vperm.xlu0 %278, %v213
  %v280 = vpop.permute.xlu0 %279
  %v282 = vmul.f32 %v143, %v268
  %v283 = vmul.f32 %v147, %v272
  %v284 = vmul.f32 %v153, %v276
  %v285 = vmul.f32 %v157, %v280
  %290 = vrot.lane.b32.xlu0 %v282, 1
  %v291 = vpop.permute.xlu0 %290
  %292 = vrot.lane.b32.xlu0 %v283, 1
  %v293 = vpop.permute.xlu0 %292
  %294 = vrot.lane.b32.xlu0 %v284, 1
  %v295 = vpop.permute.xlu0 %294
  %296 = vrot.lane.b32.xlu0 %v285, 1
  %v297 = vpop.permute.xlu0 %296
  %v302 = vadd.f32 %v262, %v291
  %v303 = vadd.f32 %v263, %v293
  %v304 = vadd.f32 %v264, %v295
  %v305 = vadd.f32 %v265, %v297
  %306 = vset.pattern.permute.xlu0 1
  %307 = vperm.xlu0 %306, %v210
  %v308 = vpop.permute.xlu0 %307
  %310 = vset.pattern.permute.xlu0 1
  %311 = vperm.xlu0 %310, %v211
  %v312 = vpop.permute.xlu0 %311
  %314 = vset.pattern.permute.xlu0 1
  %315 = vperm.xlu0 %314, %v212
  %v316 = vpop.permute.xlu0 %315
  %318 = vset.pattern.permute.xlu0 1
  %319 = vperm.xlu0 %318, %v213
  %v320 = vpop.permute.xlu0 %319
  %v322 = vmul.f32 %v143, %v308
  %v323 = vmul.f32 %v147, %v312
  %v324 = vmul.f32 %v153, %v316
  %v325 = vmul.f32 %v157, %v320
  %330 = vrot.lane.b32.xlu0 %v322, 2
  %v331 = vpop.permute.xlu0 %330
  %332 = vrot.lane.b32.xlu0 %v323, 2
  %v333 = vpop.permute.xlu0 %332
  %334 = vrot.lane.b32.xlu0 %v324, 2
  %v335 = vpop.permute.xlu0 %334
  %336 = vrot.lane.b32.xlu0 %v325, 2
  %v337 = vpop.permute.xlu0 %336
  %v342 = vadd.f32 %v302, %v331
  %v343 = vadd.f32 %v303, %v333
  %v344 = vadd.f32 %v304, %v335
  %v345 = vadd.f32 %v305, %v337
  %346 = vset.pattern.permute.xlu0 0
  %347 = vperm.xlu0 %346, %v210
  %v348 = vpop.permute.xlu0 %347
  %350 = vset.pattern.permute.xlu0 0
  %351 = vperm.xlu0 %350, %v211
  %v352 = vpop.permute.xlu0 %351
  %354 = vset.pattern.permute.xlu0 0
  %355 = vperm.xlu0 %354, %v212
  %v356 = vpop.permute.xlu0 %355
  %358 = vset.pattern.permute.xlu0 0
  %359 = vperm.xlu0 %358, %v213
  %v360 = vpop.permute.xlu0 %359
  %v362 = vmul.f32 %v143, %v348
  %v363 = vmul.f32 %v147, %v352
  %v364 = vmul.f32 %v153, %v356
  %v365 = vmul.f32 %v157, %v360
  %370 = vrot.lane.b32.xlu0 %v362, 3
  %v371 = vpop.permute.xlu0 %370
  %372 = vrot.lane.b32.xlu0 %v363, 3
  %v373 = vpop.permute.xlu0 %372
  %374 = vrot.lane.b32.xlu0 %v364, 3
  %v375 = vpop.permute.xlu0 %374
  %376 = vrot.lane.b32.xlu0 %v365, 3
  %v377 = vpop.permute.xlu0 %376
  %v382 = vadd.f32 %v342, %v371
  %v383 = vadd.f32 %v343, %v373
  %v384 = vadd.f32 %v344, %v375
  %v385 = vadd.f32 %v345, %v377
  %v386 = vmul.f32 %v145, %v221
  %v387 = vmul.f32 %v149, %v226
  %v388 = vmul.f32 %v155, %v231
  %v389 = vmul.f32 %v159, %v236
  %v390 = vadd.f32 %v386, %v245
  %v391 = vadd.f32 %v387, %v250
  %v392 = vadd.f32 %v388, %v255
  %v393 = vadd.f32 %v389, %v260
  %v394 = vmul.f32 %v145, %v268
  %v395 = vmul.f32 %v149, %v272
  %v396 = vmul.f32 %v155, %v276
  %v397 = vmul.f32 %v159, %v280
  %402 = vrot.lane.b32.xlu0 %v394, 1
  %v403 = vpop.permute.xlu0 %402
  %404 = vrot.lane.b32.xlu0 %v395, 1
  %v405 = vpop.permute.xlu0 %404
  %406 = vrot.lane.b32.xlu0 %v396, 1
  %v407 = vpop.permute.xlu0 %406
  %408 = vrot.lane.b32.xlu0 %v397, 1
  %v409 = vpop.permute.xlu0 %408
  %v414 = vadd.f32 %v390, %v403
  %v415 = vadd.f32 %v391, %v405
  %v416 = vadd.f32 %v392, %v407
  %v417 = vadd.f32 %v393, %v409
  %v418 = vmul.f32 %v145, %v308
  %v419 = vmul.f32 %v149, %v312
  %v420 = vmul.f32 %v155, %v316
  %v421 = vmul.f32 %v159, %v320
  %426 = vrot.lane.b32.xlu0 %v418, 2
  %v427 = vpop.permute.xlu0 %426
  %428 = vrot.lane.b32.xlu0 %v419, 2
  %v429 = vpop.permute.xlu0 %428
  %430 = vrot.lane.b32.xlu0 %v420, 2
  %v431 = vpop.permute.xlu0 %430
  %432 = vrot.lane.b32.xlu0 %v421, 2
  %v433 = vpop.permute.xlu0 %432
  %v438 = vadd.f32 %v414, %v427
  %v439 = vadd.f32 %v415, %v429
  %v440 = vadd.f32 %v416, %v431
  %v441 = vadd.f32 %v417, %v433
  %v442 = vmul.f32 %v145, %v348
  %v443 = vmul.f32 %v149, %v352
  %v444 = vmul.f32 %v155, %v356
  %v445 = vmul.f32 %v159, %v360
  %450 = vrot.lane.b32.xlu0 %v442, 3
  %v451 = vpop.permute.xlu0 %450
  %452 = vrot.lane.b32.xlu0 %v443, 3
  %v453 = vpop.permute.xlu0 %452
  %454 = vrot.lane.b32.xlu0 %v444, 3
  %v455 = vpop.permute.xlu0 %454
  %456 = vrot.lane.b32.xlu0 %v445, 3
  %v457 = vpop.permute.xlu0 %456
  %v462 = vadd.f32 %v438, %v451
  %v463 = vadd.f32 %v439, %v453
  %v464 = vadd.f32 %v440, %v455
  %v465 = vadd.f32 %v441, %v457
  %v466 = vmul.f32 %v382, %v462
  %v467 = vmul.f32 %v383, %v463
  %v468 = vmul.f32 %v384, %v464
  %v469 = vmul.f32 %v385, %v465
  %v470 = vmul.f32 %v196, %v221
  %v471 = vmul.f32 %v199, %v226
  %v472 = vmul.f32 %v204, %v231
  %v473 = vmul.f32 %v207, %v236
  %v474 = vadd.f32 %v470, %v245
  %v475 = vadd.f32 %v471, %v250
  %v476 = vadd.f32 %v472, %v255
  %v477 = vadd.f32 %v473, %v260
  %v478 = vmul.f32 %v196, %v268
  %v479 = vmul.f32 %v199, %v272
  %v480 = vmul.f32 %v204, %v276
  %v481 = vmul.f32 %v207, %v280
  %486 = vrot.lane.b32.xlu0 %v478, 1
  %v487 = vpop.permute.xlu0 %486
  %488 = vrot.lane.b32.xlu0 %v479, 1
  %v489 = vpop.permute.xlu0 %488
  %490 = vrot.lane.b32.xlu0 %v480, 1
  %v491 = vpop.permute.xlu0 %490
  %492 = vrot.lane.b32.xlu0 %v481, 1
  %v493 = vpop.permute.xlu0 %492
  %v498 = vadd.f32 %v474, %v487
  %v499 = vadd.f32 %v475, %v489
  %v500 = vadd.f32 %v476, %v491
  %v501 = vadd.f32 %v477, %v493
  %v502 = vmul.f32 %v196, %v308
  %v503 = vmul.f32 %v199, %v312
  %v504 = vmul.f32 %v204, %v316
  %v505 = vmul.f32 %v207, %v320
  %510 = vrot.lane.b32.xlu0 %v502, 2
  %v511 = vpop.permute.xlu0 %510
  %512 = vrot.lane.b32.xlu0 %v503, 2
  %v513 = vpop.permute.xlu0 %512
  %514 = vrot.lane.b32.xlu0 %v504, 2
  %v515 = vpop.permute.xlu0 %514
  %516 = vrot.lane.b32.xlu0 %v505, 2
  %v517 = vpop.permute.xlu0 %516
  %v522 = vadd.f32 %v498, %v511
  %v523 = vadd.f32 %v499, %v513
  %v524 = vadd.f32 %v500, %v515
  %v525 = vadd.f32 %v501, %v517
  %v526 = vmul.f32 %v196, %v348
  %v527 = vmul.f32 %v199, %v352
  %v528 = vmul.f32 %v204, %v356
  %v529 = vmul.f32 %v207, %v360
  %534 = vrot.lane.b32.xlu0 %v526, 3
  %v535 = vpop.permute.xlu0 %534
  %536 = vrot.lane.b32.xlu0 %v527, 3
  %v537 = vpop.permute.xlu0 %536
  %538 = vrot.lane.b32.xlu0 %v528, 3
  %v539 = vpop.permute.xlu0 %538
  %540 = vrot.lane.b32.xlu0 %v529, 3
  %v541 = vpop.permute.xlu0 %540
  %v546 = vadd.f32 %v522, %v535
  %v547 = vadd.f32 %v523, %v537
  %v548 = vadd.f32 %v524, %v539
  %v549 = vadd.f32 %v525, %v541
  %v550 = vmul.f32 %v466, %v546
  %v551 = vmul.f32 %v467, %v547
  %v552 = vmul.f32 %v468, %v548
  %v553 = vmul.f32 %v469, %v549
  %v554 = vpack.c.bf16 %v551, %v550
  %v555 = vpack.c.bf16 %v553, %v552
  %v556 = vld [vmem:[#allocation2] sm:$0xff]
  %v557 = vld [vmem:[#allocation2 + $0x8] sm:$0xff]
  %v558 = vld [vmem:[#allocation2 + $0x10] sm:$0xff]
  %v559 = vld [vmem:[#allocation2 + $0x18] sm:$0xff]
  %562 = vrot.lane.b32.xlu0 %v554, 32
  %v563 = vpop.permute.xlu0 %562
  %564 = vrot.lane.b32.xlu0 %v555, 32
  %v565 = vpop.permute.xlu0 %564
  %v570 = vunpack.c.l.b16 %v51
  %v571 = vunpack.c.l.b16 %v52
  %v572 = vunpack.c.l.b16 %v53
  %v573 = vunpack.c.l.b16 %v54
  %v574 = vpack.c.b16 %v571, %v570
  %v575 = vpack.c.b16 %v573, %v572
  %vm578 = vcmask 261120
  %v580 = vsel %vm578, %v563, 0
  %v583 = vsel %vm578, %v565, 0
  %585 = vmatprep.subr.bf16.mxu0 0
  %586 = vmatpush1.bf16.msra.mxu0 0
  %587 = vmatprep.subr.bf16.mxu0 0
  %588 = vmatpush1.bf16.msra.mxu0 0
  %589 = vmatprep.subr.bf16.mxu0 0
  %590 = vmatpush1.bf16.msra.mxu0 0
  %591 = vmatprep.subr.bf16.mxu0 0
  %592 = vmatpush1.bf16.msra.mxu0 0
  %593 = vmatprep.subr.bf16.mxu0 0
  %594 = vmatpush1.bf16.msra.mxu0 0
  %595 = vmatprep.subr.bf16.mxu0 0
  %596 = vmatpush1.bf16.msra.mxu0 0
  %597 = vmatprep.subr.bf16.mxu0 0
  %598 = vmatpush1.bf16.msra.mxu0 %v575
  %599 = vmatprep.subr.bf16.mxu0 0
  %600 = vmatpush1.bf16.msra.mxu0 %v574
  %601 = vmatprep.subr.bf16.mxu0 0
  %602 = vmatpush2.bf16.msra.mxu0 0
  %603 = vmatprep.subr.bf16.mxu0 0
  %604 = vmatpush2.bf16.msra.mxu0 0
  %605 = vmatprep.subr.bf16.mxu0 0
  %606 = vmatpush2.bf16.msra.mxu0 0
  %607 = vmatprep.subr.bf16.mxu0 0
  %608 = vmatpush2.bf16.msra.mxu0 0
  %609 = vmatprep.subr.bf16.mxu0 0
  %610 = vmatpush2.bf16.msra.mxu0 0
  %611 = vmatprep.subr.bf16.mxu0 0
  %612 = vmatpush2.bf16.msra.mxu0 0
  %613 = vmatprep.subr.bf16.mxu0 0
  %614 = vmatpush2.bf16.msra.mxu0 0
  %615 = vmatprep.subr.bf16.mxu0 0
  %616 = vmatpush2.bf16.msra.mxu0 0
  %617 = vmatprep.mubr.bf16.mxu0 0
  %618 = vmatmul.mubr.bf16.gmra.mxu0 %v580
  %v619 = vpop.f32.mrf.mxu0
  %v620 = vadd.f32 0.0, %v619
  %v621 = vpop.f32.mrf.mxu0
  %v622 = vpop.f32.mrf.mxu0
  %v623 = vadd.f32 0.0, %v622
  %v624 = vpop.f32.mrf.mxu0
  %625 = vmatprep.mubr.bf16.mxu0 0
  %626 = vmatmul.mubr.bf16.gmra.mxu0 %v583
  %v627 = vpop.f32.mrf.mxu0
  %v628 = vadd.f32 0.0, %v627
  %v629 = vpop.f32.mrf.mxu0
  %v630 = vpop.f32.mrf.mxu0
  %v631 = vadd.f32 0.0, %v630
  %v632 = vpop.f32.mrf.mxu0
  %633 = vdwg.mxu0
  %v634 = vadd.f32 %v556, %v620
  %v635 = vadd.f32 %v557, %v623
  %v636 = vadd.f32 %v558, %v628
  %v637 = vadd.f32 %v559, %v631
  %638 = vst.msk [vmem:[#allocation2] sm:$0xff] %vm101, %v634
  %639 = vst.msk [vmem:[#allocation2 + $0x8] sm:$0xff] %vm101, %v635
  %640 = vst.msk [vmem:[#allocation2 + $0x10] sm:$0xff] %vm101, %v636
  %641 = vst.msk [vmem:[#allocation2 + $0x18] sm:$0xff] %vm101, %v637
  // Predicated region
  $region34: #{tpu_custom_call.1} parent=0 // pred_check
    %p642 = pneg %p27
  $region35: #{tpu_custom_call.1} parent=0 // pred_check_branch
    %644 = sbr.rel (%p642) target = $region37
  $region36: #{tpu_custom_call.1} parent=0 // pred_region
    %v645 = vld [vmem:[#allocation2] sm:$0xff]
    %v646 = vld [vmem:[#allocation2 + $0x8] sm:$0xff]
    %v647 = vld [vmem:[#allocation2 + $0x10] sm:$0xff]
    %v648 = vld [vmem:[#allocation2 + $0x18] sm:$0xff]
    %v649 = vld [vmem:[%s6] sm:$0x1]
    %v651 = vlaneseq
    %v652 = vshrl.u32 %v651, 7
    %v653 = vsub.s32 0, %v652
    %v654 = vrot.slane %v649, %v653
    %v656 = vadd.f32 %v645, %v654
    %v657 = vadd.f32 %v646, %v654
    %v658 = vadd.f32 %v647, %v654
    %v659 = vadd.f32 %v648, %v654
    %660 = vst.msk [vmem:[%s7] sm:$0xff] %vm101, %v656
    %661 = vst.msk [vmem:[%s7 + $0x8] sm:$0xff] %vm101, %v657
    %662 = vst.msk [vmem:[%s7 + $0x10] sm:$0xff] %vm101, %v658
    %663 = vst.msk [vmem:[%s7 + $0x18] sm:$0xff] %vm101, %v659
  $region37: #{tpu_custom_call.1} parent=0 // pred_fallthru
    _
  // Predicated region
  $region38: #{tpu_custom_call.1} parent=0 // pred_check
    _
  $region39: #{tpu_custom_call.1} parent=0 // pred_check_branch
    %665 = sbr.rel (0) target = $region41
  $region40: #{tpu_custom_call.1} parent=0 // pred_region
    _
  $region41: #{tpu_custom_call.1} parent=0 // pred_fallthru
    _
  // Predicated region
  $region42: #{tpu_custom_call.1} parent=0 // pred_check
    _
  $region43: #{tpu_custom_call.1} parent=0 // pred_check_branch
    %667 = sbr.rel (0) target = $region45
  $region44: #{tpu_custom_call.1} parent=0 // pred_region
    _
  $region45: #{tpu_custom_call.1} parent=0 // pred_fallthru
    _

</llo_original>
